<compile_context>
chip_gen: v7x
topology: tpu7x:2x2x1
jax: 0.10.0
libtpu: 0.0.40
codegen_flags: <defaults>
</compile_context>

<pallas_src>
import functools

import jax
import jax.numpy as jnp
from jax.experimental import pallas as pl
from jax.experimental.pallas import tpu as pltpu


_LANE = 128
_TM_PREF = 512                    # M tile when B is large (fewer W re-reads)
_TN_PREF = 1024                   # lane-dense output slab
_TK_FULL_MAX = 2048               # collapse the K axis whenever D <= this
_VMEM_LIMIT = 48 * 1024 * 1024    # safe on v5e/v6e (128 MiB) and v7x (64 MiB)


def _round_up(x, m):
    return ((x + m - 1) // m) * m


def _divisor_tile(dim, max_tile, align=_LANE):
    """Largest `align`-multiple divisor of `dim` that is <= max_tile.

    Returns `dim` itself when it fits entirely (full dims are exempt from the
    (8,128) tiling constraint).  Returns None when no aligned divisor exists
    (caller falls back to padding)."""
    if dim <= max_tile:
        return dim
    t = (max_tile // align) * align
    while t >= align:
        if dim % t == 0:
            return t
        t -= align
    return None


def _qkv_kernel_fullk(x_ref, w_ref, o_ref):
    # Whole reduction dim resident in VMEM: one MXU pass per output tile,
    # no scratch, no init/finalize epilogue.
    o_ref[...] = jnp.dot(
        x_ref[...], w_ref[...], preferred_element_type=jnp.float32
    ).astype(o_ref.dtype)


def _qkv_kernel_ktiled(x_ref, w_ref, o_ref, acc_ref):
    # Fallback for very large D: K is the last grid axis ("arbitrary").
    k = pl.program_id(2)
    prod = jnp.dot(x_ref[...], w_ref[...], preferred_element_type=jnp.float32)

    @pl.when(k == 0)
    def _():
        acc_ref[...] = prod          # init-by-dot: no zero-fill pass

    @pl.when(k != 0)
    def _():
        acc_ref[...] += prod

    @pl.when(k == pl.num_programs(2) - 1)
    def _():
        o_ref[...] = acc_ref[...].astype(o_ref.dtype)


@functools.partial(
    jax.jit, static_argnames=("n_layer", "n_head", "compute_dtype")
)
def compute_qkv(x, w_t, *, n_layer, n_head, compute_dtype=jnp.bfloat16):
    """x: [B, D], w_t: [D, O] (PyTorch Linear weight transposed, O = n_layer*n_head*D).

    Returns [B, n_layer, n_head, D], same semantics as the PyTorch module
    (bias=False).  Default streams X/W in bf16 with f32 accumulation
    (|err| ~ 1e-2 relative for unit-scale inputs); pass compute_dtype=None
    for exact f32 streaming.
    """
    B, D = x.shape
    O = w_t.shape[1]
    assert O == n_layer * n_head * D
    out_dtype = x.dtype

    if compute_dtype is not None:
        if x.dtype != compute_dtype:
            x = x.astype(compute_dtype)
        if w_t.dtype != compute_dtype:
            # NOTE: for repeated calls, store w_t persistently in
            # `compute_dtype` (e.g. bf16) so this cast is not a per-call
            # HBM round-trip over the full DxO weight.
            w_t = w_t.astype(compute_dtype)

    in_isz = jnp.dtype(x.dtype).itemsize
    out_isz = jnp.dtype(out_dtype).itemsize
    align_m = 16 if in_isz < 4 else 8       # bf16 packs 16 rows / sublane reg

    # ---- M tiling (pad rows only; sliced off at the end, cheap) ----
    if B <= _TM_PREF:
        tm = max(_round_up(B, align_m), align_m)
    else:
        tm = _TM_PREF
    Mp = _round_up(B, tm)

    # ---- N tiling: a divisor of O so the weight is never padded ----
    tn = _divisor_tile(O, _TN_PREF)
    if tn is None:                          # pathological O: pad (rare)
        tn = 512
    Np = _round_up(O, tn)

    # ---- K tiling: collapse the reduction whenever D fits in VMEM ----
    if D <= _TK_FULL_MAX:
        tk, Kp, full_k = D, D, True
    else:
        tk = _divisor_tile(D, _TK_FULL_MAX)
        if tk is None:
            tk = 1024
        Kp, full_k = _round_up(D, tk), False

    if (Mp, Kp) != (B, D):
        x = jnp.pad(x, ((0, Mp - B), (0, Kp - D)))
    if (Kp, Np) != (D, O):
        w_t = jnp.pad(w_t, ((0, Kp - D), (0, Np - O)))

    m_tiles, n_tiles = Mp // tm, Np // tn
    bytes_x = Mp * Kp * in_isz
    bytes_w = Kp * Np * in_isz
    bytes_o = Mp * Np * out_isz

    if full_k:
        out = pl.pallas_call(
            _qkv_kernel_fullk,
            out_shape=jax.ShapeDtypeStruct((Mp, Np), out_dtype),
            grid=(m_tiles, n_tiles),
            in_specs=[
                pl.BlockSpec((tm, tk), lambda i, j: (i, 0)),
                pl.BlockSpec((tk, tn), lambda i, j: (0, j)),
            ],
            out_specs=pl.BlockSpec((tm, tn), lambda i, j: (i, j)),
            compiler_params=pltpu.CompilerParams(
                dimension_semantics=("parallel", "parallel"),
                vmem_limit_bytes=_VMEM_LIMIT,
            ),
            cost_estimate=pl.CostEstimate(
                flops=2 * Mp * Kp * Np,
                transcendentals=0,
                # X block index is constant across the fast N axis -> read
                # once; W column panels re-streamed once per M tile.
                bytes_accessed=bytes_x + bytes_w * m_tiles + bytes_o,
            ),
        )(x, w_t)
    else:
        k_tiles = Kp // tk
        out = pl.pallas_call(
            _qkv_kernel_ktiled,
            out_shape=jax.ShapeDtypeStruct((Mp, Np), out_dtype),
            grid=(m_tiles, n_tiles, k_tiles),
            in_specs=[
                pl.BlockSpec((tm, tk), lambda i, j, k: (i, k)),
                pl.BlockSpec((tk, tn), lambda i, j, k: (k, j)),
            ],
            out_specs=pl.BlockSpec((tm, tn), lambda i, j, k: (i, j)),
            scratch_shapes=[pltpu.VMEM((tm, tn), jnp.float32)],
            compiler_params=pltpu.CompilerParams(
                dimension_semantics=("parallel", "parallel", "arbitrary"),
                vmem_limit_bytes=_VMEM_LIMIT,
            ),
            cost_estimate=pl.CostEstimate(
                flops=2 * Mp * Kp * Np,
                transcendentals=0,
                bytes_accessed=bytes_x * n_tiles + bytes_w * m_tiles + bytes_o,
            ),
        )(x, w_t)

    if Np != O:
        out = out[:, :O]
    if Mp != B:
        out = out[:B]
    # Glue: reshape to [B, n_layer, n_head, word_vec_d] like the PyTorch module.
    return out.reshape(B, n_layer, n_head, D)


if __name__ == "__main__":
    key = jax.random.PRNGKey(0)
    kx, kw, kx2, kw2 = jax.random.split(key, 4)

    # --- Small, module-consistent shapes (single-tile, collapsed-K path). ---
    batch, word_vec_d, n_head, n_layer = 8, 32, 4, 3
    out_features = n_layer * n_head * word_vec_d  # 384

    x = jax.random.normal(kx, (batch, word_vec_d), dtype=jnp.float32)
    # PyTorch Linear weight is [out_features, in_features]; pass its transpose.
    w = jax.random.normal(kw, (out_features, word_vec_d), dtype=jnp.float32) * 0.02
    w_t = w.T  # [D, O]

    ref = jnp.dot(x, w_t, precision=jax.lax.Precision.HIGHEST).reshape(
        batch, n_layer, n_head, word_vec_d
    )

    # Default path: bf16 streaming, f32 accumulation.
    out_bf16 = compute_qkv(x, w_t, n_layer=n_layer, n_head=n_head)
    jax.block_until_ready(out_bf16)
    assert out_bf16.shape == (batch, n_layer, n_head, word_vec_d)
    assert out_bf16.dtype == x.dtype
    assert jnp.allclose(out_bf16, ref, atol=2e-2, rtol=2e-2)

    # Exact-precision path: matches the f32 PyTorch module numerics.
    out_f32 = compute_qkv(
        x, w_t, n_layer=n_layer, n_head=n_head, compute_dtype=None
    )
    jax.block_until_ready(out_f32)
    assert jnp.allclose(out_f32, ref, atol=1e-2, rtol=1e-2)

    # --- Larger, non-aligned shapes: multi-N-tile grid, row padding only,
    #     divisor-chosen tn (768 | 7680) so the weight is never padded. ---
    b2, d2, h2, l2 = 300, 640, 4, 3
    o2 = l2 * h2 * d2  # 7680
    x2 = jax.random.normal(kx2, (b2, d2), dtype=jnp.float32)
    w2_t = (jax.random.normal(kw2, (o2, d2), dtype=jnp.float32) * 0.02).T

    out2 = compute_qkv(x2, w2_t, n_layer=l2, n_head=h2)
    jax.block_until_ready(out2)

    ref2 = jnp.dot(x2, w2_t, precision=jax.lax.Precision.HIGHEST).reshape(
        b2, l2, h2, d2
    )
    assert out2.shape == (b2, l2, h2, d2)
    assert jnp.allclose(out2, ref2, atol=5e-2, rtol=5e-2)

    print("KERNEL_OK")
</pallas_src>

<mosaic_0001>
module attributes {stable_mosaic.version = 11 : i64} {
  func.func @_qkv_kernel_fullk(%arg0: i32, %arg1: i32, %arg2: memref<16x32xbf16, #tpu.memory_space<vmem>>, %arg3: memref<32x384xbf16, #tpu.memory_space<vmem>>, %arg4: memref<16x384xf32, #tpu.memory_space<vmem>>) attributes {dimension_semantics = [#tpu.dimension_semantics<parallel>, #tpu.dimension_semantics<parallel>], iteration_bounds = array<i64: 1, 1>, scalar_prefetch = 0 : i64, scratch_operands = 0 : i64, tpu.core_type = #tpu.core_type<tc>, window_params = [{transform_indices = @transform_0, window_bounds = array<i64: 16, 32>}, {transform_indices = @transform_1, window_bounds = array<i64: 32, 384>}, {transform_indices = @transform_2, window_bounds = array<i64: 16, 384>}]} {
    %c0 = arith.constant 0 : index
    %c0_0 = arith.constant 0 : index
    %0 = vector.load %arg2[%c0, %c0_0] : memref<16x32xbf16, #tpu.memory_space<vmem>>, vector<16x32xbf16>
    %c0_1 = arith.constant 0 : index
    %c0_2 = arith.constant 0 : index
    %1 = vector.load %arg3[%c0_1, %c0_2] : memref<32x384xbf16, #tpu.memory_space<vmem>>, vector<32x384xbf16>
    %cst = arith.constant dense<0.000000e+00> : vector<16x384xf32>
    %2 = tpu.matmul %0, %1, %cst {dimension_numbers = #tpu.dot_dimension_numbers<[1], [0], [0], [1], [0, 0, 1, 1], [], []>} : vector<16x32xbf16>, vector<32x384xbf16>, vector<16x384xf32> -> vector<16x384xf32>
    %c0_3 = arith.constant 0 : index
    %c0_4 = arith.constant 0 : index
    %3 = vector.load %arg4[%c0_3, %c0_4] : memref<16x384xf32, #tpu.memory_space<vmem>>, vector<16x384xf32>
    tpu.vector_store %arg4[%c0_3, %c0_4], %2 {strides = array<i32>} : memref<16x384xf32, #tpu.memory_space<vmem>>, vector<16x384xf32>,
    return
  }
  func.func @transform_0(%arg0: i32, %arg1: i32) -> (i32, i32) {
    %c0_i32 = arith.constant 0 : i32
    %c0_i32_0 = arith.constant 0 : i32
    return %arg0, %c0_i32 : i32, i32
  }
  func.func @transform_1(%arg0: i32, %arg1: i32) -> (i32, i32) {
    %c0_i32 = arith.constant 0 : i32
    %c0_i32_0 = arith.constant 0 : i32
    return %c0_i32, %arg1 : i32, i32
  }
  func.func @transform_2(%arg0: i32, %arg1: i32) -> (i32, i32) {
    %c0_i32 = arith.constant 0 : i32
    return %arg0, %arg1 : i32, i32
  }
}

</mosaic_0001>

<llo_original>
// kernel: compute_qkv.1
$region0: #{compute_qkv.1}
  #allocation0 [shape = 'u32[]', space=smem, size = 0x4, offset = 0x4, fixed_abs, tag = 'smem constant byte address 0x4 - core index']
  #allocation1 [shape = 'u32[144,128]{1,0:T(1,128)}', space=vmem, size = 0x12000, scoped, tag = 'internal scratch']
  %s0 = inlined_call_operand.vmem [shape: bf16[16,32], index: 0, kind: input, shape index: {}]
  %s1 = inlined_call_operand.vmem [shape: bf16[32,384], index: 1, kind: input, shape index: {}]
  %s2 = inlined_call_operand.vmem [shape: f32[16,384], index: 2, kind: output, shape index: {}]
  %s3 = sld [smem:[#allocation0]]
  $region18: #{compute_qkv.1} parent=0
    _
  %s5 = ssub.s32 1, %s3
  %s6 = scalar_select 0, %s5, %s3
  // Predicated region
  $region2: #{compute_qkv.1} parent=0 // pred_check
    _
  $region3: #{compute_qkv.1} parent=0 // pred_check_branch
    %8 = sbr.rel (0) target = $region5
  $region4: #{compute_qkv.1} parent=0 // pred_region
    _
  $region5: #{compute_qkv.1} parent=0 // pred_fallthru
    _
  // Predicated region
  $region6: #{compute_qkv.1} parent=0 // pred_check
    _
  $region7: #{compute_qkv.1} parent=0 // pred_check_branch
    %10 = sbr.rel (0) target = $region9
  $region8: #{compute_qkv.1} parent=0 // pred_region
    _
  $region9: #{compute_qkv.1} parent=0 // pred_fallthru
    _
  %v12 = vld [vmem:[%s0] sm:$0xf]
  %v13 = vld [vmem:[%s0 + $0x4] sm:$0xf]
  %v14 = vld [vmem:[%s1] sm:$0xff]
  %v15 = vld [vmem:[%s1 + $0x8] sm:$0xf]
  %v16 = vld [vmem:[%s1 + $0xc] sm:$0xff]
  %v17 = vld [vmem:[%s1 + $0x14] sm:$0xf]
  %v18 = vld [vmem:[%s1 + $0x18] sm:$0xff]
  %v19 = vld [vmem:[%s1 + $0x20] sm:$0xf]
  %v20 = vld [vmem:[%s1 + $0x24] sm:$0xff]
  %v21 = vld [vmem:[%s1 + $0x2c] sm:$0xf]
  %v24 = vunpack.c.l.b16 %v12
  %v25 = vunpack.c.l.b16 %v13
  %v26 = vpack.c.b16 %v25, %v24
  %v35 = vunpack.c.l.b16 %v14
  %v36 = vunpack.c.h.b16 %v14
  %v37 = vunpack.c.l.b16 %v15
  %v38 = vunpack.c.l.b16 %v16
  %v39 = vunpack.c.h.b16 %v16
  %v40 = vunpack.c.l.b16 %v17
  %v41 = vunpack.c.l.b16 %v18
  %v42 = vunpack.c.h.b16 %v18
  %v43 = vunpack.c.l.b16 %v19
  %v44 = vunpack.c.l.b16 %v20
  %v45 = vunpack.c.h.b16 %v20
  %v46 = vunpack.c.l.b16 %v21
  %v47 = vpack.c.b16 %v38, %v35
  %v48 = vpack.c.b16 %v39, %v36
  %v49 = vpack.c.b16 %v40, %v37
  %v50 = vpack.c.b16 %v44, %v41
  %v51 = vpack.c.b16 %v45, %v42
  %v52 = vpack.c.b16 %v46, %v43
  %vm59 = vcmask 261120
  %v61 = vsel %vm59, %v26, 0
  %63 = vmatprep.subr.bf16.mxu0 %v48
  %64 = vmatpush1.bf16.msra.mxu0 %v47
  %65 = vmatprep.subr.bf16.mxu0 %v51
  %66 = vmatpush1.bf16.msra.mxu0 %v50
  %67 = vmatprep.subr.bf16.mxu0 0
  %68 = vmatpush1.bf16.msra.mxu0 0
  %69 = vmatprep.subr.bf16.mxu0 0
  %70 = vmatpush1.bf16.msra.mxu0 0
  %71 = vmatprep.subr.bf16.mxu0 0
  %72 = vmatpush1.bf16.msra.mxu0 0
  %73 = vmatprep.subr.bf16.mxu0 0
  %74 = vmatpush1.bf16.msra.mxu0 0
  %75 = vmatprep.subr.bf16.mxu0 0
  %76 = vmatpush1.bf16.msra.mxu0 0
  %77 = vmatprep.subr.bf16.mxu0 0
  %78 = vmatpush1.bf16.msra.mxu0 0
  %79 = vmatprep.subr.bf16.mxu0 0
  %80 = vmatpush1.bf16.msra.mxu0 0
  %81 = vmatprep.subr.bf16.mxu0 0
  %82 = vmatpush1.bf16.msra.mxu0 0
  %83 = vmatprep.subr.bf16.mxu0 0
  %84 = vmatpush1.bf16.msra.mxu0 0
  %85 = vmatprep.subr.bf16.mxu0 0
  %86 = vmatpush1.bf16.msra.mxu0 0
  %87 = vmatprep.subr.bf16.mxu0 0
  %88 = vmatpush1.bf16.msra.mxu0 0
  %89 = vmatprep.subr.bf16.mxu0 0
  %90 = vmatpush1.bf16.msra.mxu0 0
  %91 = vmatprep.subr.bf16.mxu0 0
  %92 = vmatpush1.bf16.msra.mxu0 0
  %93 = vmatprep.subr.bf16.mxu0 0
  %94 = vmatpush1.bf16.msra.mxu0 0
  %95 = vmatprep.mubr.bf16.mxu0 0
  %96 = vmatmul.mubr.bf16.gmra.mrb[0].mxu0 %v61
  %v97 = vpop.f32.mrb[0].mxu0
  %v98 = vadd.f32 0.0, %v97
  %v99 = vpop.f32.mrb[0].mxu0
  %v100 = vadd.f32 0.0, %v99
  %v101 = vpop.f32.mrb[0].mxu0
  %v102 = vadd.f32 0.0, %v101
  %v103 = vpop.f32.mrb[0].mxu0
  %v104 = vadd.f32 0.0, %v103
  %105 = vdwg.mxu0
  %106 = vmatprep.subr.bf16.mxu0 0
  %107 = vmatpush1.bf16.msra.mxu0 %v49
  %108 = vmatprep.subr.bf16.mxu0 0
  %109 = vmatpush1.bf16.msra.mxu0 %v52
  %110 = vmatprep.subr.bf16.mxu0 0
  %111 = vmatpush1.bf16.msra.mxu0 0
  %112 = vmatprep.subr.bf16.mxu0 0
  %113 = vmatpush1.bf16.msra.mxu0 0
  %114 = vmatprep.subr.bf16.mxu0 0
  %115 = vmatpush1.bf16.msra.mxu0 0
  %116 = vmatprep.subr.bf16.mxu0 0
  %117 = vmatpush1.bf16.msra.mxu0 0
  %118 = vmatprep.subr.bf16.mxu0 0
  %119 = vmatpush1.bf16.msra.mxu0 0
  %120 = vmatprep.subr.bf16.mxu0 0
  %121 = vmatpush1.bf16.msra.mxu0 0
  %122 = vmatprep.subr.bf16.mxu0 0
  %123 = vmatpush1.bf16.msra.mxu0 0
  %124 = vmatprep.subr.bf16.mxu0 0
  %125 = vmatpush1.bf16.msra.mxu0 0
  %126 = vmatprep.subr.bf16.mxu0 0
  %127 = vmatpush1.bf16.msra.mxu0 0
  %128 = vmatprep.subr.bf16.mxu0 0
  %129 = vmatpush1.bf16.msra.mxu0 0
  %130 = vmatprep.subr.bf16.mxu0 0
  %131 = vmatpush1.bf16.msra.mxu0 0
  %132 = vmatprep.subr.bf16.mxu0 0
  %133 = vmatpush1.bf16.msra.mxu0 0
  %134 = vmatprep.subr.bf16.mxu0 0
  %135 = vmatpush1.bf16.msra.mxu0 0
  %136 = vmatprep.subr.bf16.mxu0 0
  %137 = vmatpush1.bf16.msra.mxu0 0
  %138 = vmatprep.mubr.bf16.mxu0 0
  %139 = vmatmul.mubr.bf16.gmra.mrb[0].mxu0 %v61
  %v140 = vpop.f32.mrb[0].mxu0
  %v141 = vadd.f32 0.0, %v140
  %v142 = vpop.f32.mrb[0].mxu0
  %v143 = vpop.f32.mrb[0].mxu0
  %v144 = vadd.f32 0.0, %v143
  %v145 = vpop.f32.mrb[0].mxu0
  %146 = vdwg.mxu0
  %147 = vst [vmem:[%s2] sm:$0xff] %v98
  %148 = vst [vmem:[%s2 + $0x8] sm:$0xff] %v100
  %149 = vst [vmem:[%s2 + $0x10] sm:$0xff] %v141
  %150 = vst [vmem:[%s2 + $0x18] sm:$0xff] %v102
  %151 = vst [vmem:[%s2 + $0x20] sm:$0xff] %v104
  %152 = vst [vmem:[%s2 + $0x28] sm:$0xff] %v144
  // Predicated region
  $region10: #{compute_qkv.1} parent=0 // pred_check
    _
  $region11: #{compute_qkv.1} parent=0 // pred_check_branch
    %154 = sbr.rel (0) target = $region13
  $region12: #{compute_qkv.1} parent=0 // pred_region
    _
  $region13: #{compute_qkv.1} parent=0 // pred_fallthru
    _
  // Predicated region
  $region14: #{compute_qkv.1} parent=0 // pred_check
    _
  $region15: #{compute_qkv.1} parent=0 // pred_check_branch
    %156 = sbr.rel (0) target = $region17
  $region16: #{compute_qkv.1} parent=0 // pred_region
    _
  $region17: #{compute_qkv.1} parent=0 // pred_fallthru
    _

</llo_original>
